<compile_context>
chip_gen: v7x
topology: tpu7x:2x2x1
jax: 0.10.0
libtpu: 0.0.40
codegen_flags: <defaults>
</compile_context>

<pallas_src>
import jax
import jax.numpy as jnp
from jax.experimental import pallas as pl
from jax.experimental.pallas import tpu as pltpu


def _ffn_kernel(x_ref, scale_ref, shift_ref, wf_ref, bf_ref, o_ref, acc_ref):
    k = pl.program_id(2)

    @pl.when(k == 0)
    def _():
        acc_ref[...] = jnp.zeros_like(acc_ref)

    # BatchNorm apply (stats precomputed in the wrapper): xn = x * scale + shift.
    xn = x_ref[...].astype(jnp.float32) * scale_ref[...] + shift_ref[...]

    # One fused MXU pass per (b, j, k) block: RHS tile = [w1_tile_j | w2_tile_j].
    acc_ref[...] += jnp.dot(
        xn.astype(wf_ref.dtype), wf_ref[...], preferred_element_type=jnp.float32
    )

    @pl.when(k == pl.num_programs(2) - 1)
    def _():
        tn = o_ref.shape[-1]                     # 128-lane output tile
        h = acc_ref[...] + bf_ref[...]           # (tb, 2*tn)
        h1 = h[:, :tn]                           # w1 half (lane-aligned slice)
        h2 = h[:, tn:]                           # w2 half
        o_ref[...] = (h1 * jax.nn.sigmoid(h1) * h2).astype(o_ref.dtype)


def _round_up(n, m):
    return (n + m - 1) // m * m


def _pick_tile(n, candidates, fallback):
    for c in candidates:
        if n % c == 0:
            return c
    return fallback


def feed_forward(x, gamma, beta, w1, b1, w2, b2, *, eps=1e-5):
    """x: (B, D); w1, w2: (D, H); b1, b2: (1, H); gamma, beta: (1, D)."""
    B, D = x.shape
    H = w1.shape[1]
    out_dtype = x.dtype

    # ---- BatchNorm1d statistics (training mode: batch stats, biased variance).
    # Hoisted out of the kernel so the GEMM can tile B/K without a per-tile
    # cross-sublane reduction on the critical path.
    # TODO(synk): running_mean/running_var buffer updates (training side effect)
    # are not materialized; only the forward output is produced.
    xf = x.astype(jnp.float32)
    mean = jnp.mean(xf, axis=0, keepdims=True)
    var = jnp.mean(jnp.square(xf - mean), axis=0, keepdims=True)
    scale = gamma.astype(jnp.float32) * jax.lax.rsqrt(var + eps)   # (1, D)
    shift = beta.astype(jnp.float32) - mean * scale                # (1, D)

    # ---- Tile sizes.
    tn = 128                                   # output lane tile (lane-dense vst)
    tk = _pick_tile(D, (512, 256, 128), D)     # K tile (full D if small / ragged)
    B_pad = _round_up(B, 8)
    tb = _pick_tile(B_pad, (256, 128, 64, 32, 16, 8), B_pad)

    H_pad = _round_up(H, tn)
    n_blocks = H_pad // tn

    # ---- Pad H and fuse the two projections into one (D, 2*H_pad) RHS where
    # each 2*tn-wide block j is [w1[:, j*tn:(j+1)*tn] | w2[:, j*tn:(j+1)*tn]].
    def pad_h(a):
        return jnp.pad(a, ((0, 0), (0, H_pad - H))) if H_pad != H else a

    w1p, w2p, b1p, b2p = pad_h(w1), pad_h(w2), pad_h(b1), pad_h(b2)
    wf = jnp.concatenate(
        [w1p.reshape(D, n_blocks, tn), w2p.reshape(D, n_blocks, tn)], axis=-1
    ).reshape(D, 2 * H_pad)
    bf = jnp.concatenate(
        [b1p.reshape(1, n_blocks, tn), b2p.reshape(1, n_blocks, tn)], axis=-1
    ).reshape(1, 2 * H_pad).astype(jnp.float32)

    xp = jnp.pad(x, ((0, B_pad - B), (0, 0))) if B_pad != B else x

    grid = (B_pad // tb, n_blocks, D // tk)

    out = pl.pallas_call(
        _ffn_kernel,
        out_shape=jax.ShapeDtypeStruct((B_pad, H_pad), out_dtype),
        grid_spec=pltpu.PrefetchScalarGridSpec(
            num_scalar_prefetch=0,
            grid=grid,
            in_specs=[
                pl.BlockSpec((tb, tk), lambda b, j, k: (b, k)),       # x
                pl.BlockSpec((1, tk), lambda b, j, k: (0, k)),        # BN scale
                pl.BlockSpec((1, tk), lambda b, j, k: (0, k)),        # BN shift
                pl.BlockSpec((tk, 2 * tn), lambda b, j, k: (k, j)),   # fused W
                pl.BlockSpec((1, 2 * tn), lambda b, j, k: (0, j)),    # fused bias
            ],
            out_specs=pl.BlockSpec((tb, tn), lambda b, j, k: (b, j)),
            scratch_shapes=[pltpu.VMEM((tb, 2 * tn), jnp.float32)],
        ),
        compiler_params=pltpu.CompilerParams(
            dimension_semantics=("parallel", "parallel", "arbitrary"),
            vmem_limit_bytes=48 << 20,
        ),
    )(xp, scale, shift, wf, bf)

    return out[:B, :H]


def reference(x, gamma, beta, w1, b1, w2, b2):
    x = x.astype(jnp.float32)
    mean = jnp.mean(x, axis=0, keepdims=True)
    var = jnp.mean((x - mean) ** 2, axis=0, keepdims=True)
    xn = (x - mean) / jnp.sqrt(var + 1e-5) * gamma + beta
    h1 = xn @ w1 + b1
    h2 = xn @ w2 + b2
    return jax.nn.silu(h1) * h2


if __name__ == "__main__":
    B, D, H = 8, 32, 64   # batch, input_dim, hidden_dim

    key = jax.random.PRNGKey(0)
    kx, k1, k2, kb1, kb2 = jax.random.split(key, 5)

    x = jax.random.normal(kx, (B, D), dtype=jnp.float32)

    # Deterministic parameter init (PyTorch-Linear-like uniform scale).
    bound = 1.0 / jnp.sqrt(D)
    w1 = jax.random.uniform(k1, (D, H), minval=-bound, maxval=bound, dtype=jnp.float32)
    w2 = jax.random.uniform(k2, (D, H), minval=-bound, maxval=bound, dtype=jnp.float32)
    b1 = jax.random.uniform(kb1, (1, H), minval=-bound, maxval=bound, dtype=jnp.float32)
    b2 = jax.random.uniform(kb2, (1, H), minval=-bound, maxval=bound, dtype=jnp.float32)

    # BatchNorm1d affine params: gamma=1, beta=0 at init.
    gamma = jnp.ones((1, D), dtype=jnp.float32)
    beta = jnp.zeros((1, D), dtype=jnp.float32)

    out = feed_forward(x, gamma, beta, w1, b1, w2, b2)
    out = jax.block_until_ready(out)

    ref = reference(x, gamma, beta, w1, b1, w2, b2)
    assert out.shape == (B, H), out.shape
    assert jnp.allclose(out, ref, atol=1e-4, rtol=1e-4), float(jnp.max(jnp.abs(out - ref)))

    print("KERNEL_OK")
</pallas_src>

<mosaic_0001>
module attributes {stable_mosaic.version = 11 : i64} {
  func.func @_ffn_kernel(%arg0: i32, %arg1: i32, %arg2: i32, %arg3: memref<8x32xf32, #tpu.memory_space<vmem>>, %arg4: memref<1x32xf32, #tpu.memory_space<vmem>>, %arg5: memref<1x32xf32, #tpu.memory_space<vmem>>, %arg6: memref<32x256xf32, #tpu.memory_space<vmem>>, %arg7: memref<1x256xf32, #tpu.memory_space<vmem>>, %arg8: memref<8x128xf32, #tpu.memory_space<vmem>>, %arg9: memref<8x256xf32, #tpu.memory_space<vmem>>) attributes {dimension_semantics = [#tpu.dimension_semantics<parallel>, #tpu.dimension_semantics<parallel>, #tpu.dimension_semantics<arbitrary>], iteration_bounds = array<i64: 1, 1, 1>, scalar_prefetch = 0 : i64, scratch_operands = 1 : i64, tpu.core_type = #tpu.core_type<tc>, window_params = [{transform_indices = @transform_0, window_bounds = array<i64: 8, 32>}, {transform_indices = @transform_1, window_bounds = array<i64: 1, 32>}, {transform_indices = @transform_2, window_bounds = array<i64: 1, 32>}, {transform_indices = @transform_3, window_bounds = array<i64: 32, 256>}, {transform_indices = @transform_4, window_bounds = array<i64: 1, 256>}, {transform_indices = @transform_5, window_bounds = array<i64: 8, 128>}]} {
    %c0_i32 = arith.constant 0 : i32
    %0 = arith.cmpi eq, %arg2, %c0_i32 : i32
    %1 = arith.extui %0 : i1 to i32
    %c0_i32_0 = arith.constant 0 : i32
    %2 = arith.cmpi ne, %1, %c0_i32_0 : i32
    scf.if %2 {
      %cst_14 = arith.constant 0.000000e+00 : f32
      %18 = vector.broadcast %cst_14 : f32 to vector<8x256xf32>
      %c0_15 = arith.constant 0 : index
      %c0_16 = arith.constant 0 : index
      %19 = vector.load %arg9[%c0_15, %c0_16] : memref<8x256xf32, #tpu.memory_space<vmem>>, vector<8x256xf32>
      tpu.vector_store %arg9[%c0_15, %c0_16], %18 {strides = array<i32>} : memref<8x256xf32, #tpu.memory_space<vmem>>, vector<8x256xf32>,
    } else {
    }
    %c0 = arith.constant 0 : index
    %c0_1 = arith.constant 0 : index
    %3 = vector.load %arg3[%c0, %c0_1] : memref<8x32xf32, #tpu.memory_space<vmem>>, vector<8x32xf32>
    %c0_2 = arith.constant 0 : index
    %c0_3 = arith.constant 0 : index
    %4 = vector.load %arg4[%c0_2, %c0_3] : memref<1x32xf32, #tpu.memory_space<vmem>>, vector<1x32xf32>
    %5 = vector.broadcast %4 : vector<1x32xf32> to vector<8x32xf32>
    %6 = arith.mulf %3, %5 : vector<8x32xf32>
    %c0_4 = arith.constant 0 : index
    %c0_5 = arith.constant 0 : index
    %7 = vector.load %arg5[%c0_4, %c0_5] : memref<1x32xf32, #tpu.memory_space<vmem>>, vector<1x32xf32>
    %8 = vector.broadcast %7 : vector<1x32xf32> to vector<8x32xf32>
    %9 = arith.addf %6, %8 : vector<8x32xf32>
    %c0_6 = arith.constant 0 : index
    %c0_7 = arith.constant 0 : index
    %10 = vector.load %arg9[%c0_6, %c0_7] : memref<8x256xf32, #tpu.memory_space<vmem>>, vector<8x256xf32>
    %c0_8 = arith.constant 0 : index
    %c0_9 = arith.constant 0 : index
    %11 = vector.load %arg6[%c0_8, %c0_9] : memref<32x256xf32, #tpu.memory_space<vmem>>, vector<32x256xf32>
    %cst = arith.constant dense<0.000000e+00> : vector<8x256xf32>
    %12 = tpu.matmul %9, %11, %cst {dimension_numbers = #tpu.dot_dimension_numbers<[1], [0], [0], [1], [0, 0, 1, 1], [], []>} : vector<8x32xf32>, vector<32x256xf32>, vector<8x256xf32> -> vector<8x256xf32>
    %13 = arith.addf %10, %12 : vector<8x256xf32>
    %c0_10 = arith.constant 0 : index
    %c0_11 = arith.constant 0 : index
    %14 = vector.load %arg9[%c0_10, %c0_11] : memref<8x256xf32, #tpu.memory_space<vmem>>, vector<8x256xf32>
    tpu.vector_store %arg9[%c0_10, %c0_11], %13 {strides = array<i32>} : memref<8x256xf32, #tpu.memory_space<vmem>>, vector<8x256xf32>,
    %c0_i32_12 = arith.constant 0 : i32
    %15 = arith.cmpi eq, %arg2, %c0_i32_12 : i32
    %16 = arith.extui %15 : i1 to i32
    %c0_i32_13 = arith.constant 0 : i32
    %17 = arith.cmpi ne, %16, %c0_i32_13 : i32
    scf.if %17 {
      %c0_14 = arith.constant 0 : index
      %c0_15 = arith.constant 0 : index
      %18 = vector.load %arg9[%c0_14, %c0_15] : memref<8x256xf32, #tpu.memory_space<vmem>>, vector<8x256xf32>
      %c0_16 = arith.constant 0 : index
      %c0_17 = arith.constant 0 : index
      %19 = vector.load %arg7[%c0_16, %c0_17] : memref<1x256xf32, #tpu.memory_space<vmem>>, vector<1x256xf32>
      %20 = vector.broadcast %19 : vector<1x256xf32> to vector<8x256xf32>
      %21 = arith.addf %18, %20 : vector<8x256xf32>
      %22 = vector.extract_strided_slice %21 {offsets = [0, 0], sizes = [8, 128], strides = [1, 1]} : vector<8x256xf32> to vector<8x128xf32>
      %23 = vector.extract_strided_slice %21 {offsets = [0, 128], sizes = [8, 128], strides = [1, 1]} : vector<8x256xf32> to vector<8x128xf32>
      %24 = arith.negf %22 : vector<8x128xf32>
      %25 = math.exp %24 : vector<8x128xf32>
      %cst_18 = arith.constant 1.000000e+00 : f32
      %26 = vector.broadcast %cst_18 : f32 to vector<8x128xf32>
      %27 = arith.addf %26, %25 : vector<8x128xf32>
      %28 = arith.divf %26, %27 : vector<8x128xf32>
      %29 = arith.mulf %22, %28 : vector<8x128xf32>
      %30 = arith.mulf %29, %23 : vector<8x128xf32>
      %c0_19 = arith.constant 0 : index
      %c0_20 = arith.constant 0 : index
      %31 = vector.load %arg8[%c0_19, %c0_20] : memref<8x128xf32, #tpu.memory_space<vmem>>, vector<8x128xf32>
      tpu.vector_store %arg8[%c0_19, %c0_20], %30 {strides = array<i32>} : memref<8x128xf32, #tpu.memory_space<vmem>>, vector<8x128xf32>,
    } else {
    }
    return
  }
  func.func @transform_0(%arg0: i32, %arg1: i32, %arg2: i32) -> (i32, i32) {
    %c0_i32 = arith.constant 0 : i32
    return %arg0, %arg2 : i32, i32
  }
  func.func @transform_1(%arg0: i32, %arg1: i32, %arg2: i32) -> (i32, i32) {
    %c0_i32 = arith.constant 0 : i32
    %c0_i32_0 = arith.constant 0 : i32
    return %c0_i32, %arg2 : i32, i32
  }
  func.func @transform_2(%arg0: i32, %arg1: i32, %arg2: i32) -> (i32, i32) {
    %c0_i32 = arith.constant 0 : i32
    %c0_i32_0 = arith.constant 0 : i32
    return %c0_i32, %arg2 : i32, i32
  }
  func.func @transform_3(%arg0: i32, %arg1: i32, %arg2: i32) -> (i32, i32) {
    %c0_i32 = arith.constant 0 : i32
    return %arg2, %arg1 : i32, i32
  }
  func.func @transform_4(%arg0: i32, %arg1: i32, %arg2: i32) -> (i32, i32) {
    %c0_i32 = arith.constant 0 : i32
    %c0_i32_0 = arith.constant 0 : i32
    return %c0_i32, %arg1 : i32, i32
  }
  func.func @transform_5(%arg0: i32, %arg1: i32, %arg2: i32) -> (i32, i32) {
    %c0_i32 = arith.constant 0 : i32
    return %arg0, %arg1 : i32, i32
  }
}

</mosaic_0001>

<llo_original>
// kernel: tpu_custom_call.1
$region0: #{tpu_custom_call.1}
  #allocation0 [shape = 'u32[]', space=smem, size = 0x4, offset = 0x4, fixed_abs, tag = 'smem constant byte address 0x4 - core index']
  #allocation1 [shape = 'u32[144,128]{1,0:T(1,128)}', space=vmem, size = 0x12000, scoped, tag = 'internal scratch']
  #allocation2 [shape = 'f32[8,256]{1,0:T(8,128)}', space=vmem, size = 0x2000, scoped, tag = 'scratch operand']
  %s0 = inlined_call_operand.hbm [shape: f32[8,32], index: 0, kind: input, shape index: {}]
  %s1 = inlined_call_operand.vmem [shape: f32[1,32], index: 1, kind: input, shape index: {}]
  %s2 = inlined_call_operand.vmem [shape: f32[1,32], index: 2, kind: input, shape index: {}]
  %s3 = inlined_call_operand.hbm [shape: f32[32,256], index: 3, kind: input, shape index: {}]
  %s4 = inlined_call_operand.vmem [shape: f32[1,256], index: 4, kind: input, shape index: {}]
  %s5 = inlined_call_operand.hbm [shape: f32[8,128], index: 5, kind: output, shape index: {}]
  %s6 = sld [smem:[#allocation0]]
  $region46: #{tpu_custom_call.1} parent=0
    _
  %s8 = ssub.s32 1, %s6
  %s9 = scalar_select 0, %s8, %s6
  $region1: #{tpu_custom_call.1} parent=0
    #allocation3 [shape = 'u8[4096]{0}', space=vmem, size = 0x1000, scoped, tag = 'input window, operand 0, single buffered']
    #allocation4 [shape = 's32[1]{0}', space=sflag, size = 0x4, scoped, tag = 'scoped memory for tpu_custom_call.1']
    #allocation5 [shape = 's32[1]{0}', space=sflag, size = 0x4, scoped, tag = 'scoped memory for tpu_custom_call.1']
    #allocation6 [shape = 'u8[32768]{0}', space=vmem, size = 0x8000, scoped, tag = 'input window, operand 3, single buffered']
    #allocation7 [shape = 's32[1]{0}', space=sflag, size = 0x4, scoped, tag = 'scoped memory for tpu_custom_call.1']
    #allocation8 [shape = 'u8[4096]{0}', space=vmem, size = 0x1000, scoped, tag = 'output window, operand 0, single buffered']
    %10 = vsyncpa [#allocation4], 0
    %11 = vsyncpa [#allocation7], 0
    %12 = vsyncpa [#allocation5], 0
    // Predicated region
    $region2: #{tpu_custom_call.1} parent=1 // pred_check
      _
    $region3: #{tpu_custom_call.1} parent=1 // pred_check_branch
      %14 = sbr.rel (0) target = $region5
    $region4: #{tpu_custom_call.1} parent=1 // pred_region
      %s16 = ssub.s32 128, 128
      %17 = vsyncadd [#allocation4], %s16
      %s19 = sshll.u32 [#allocation3], 4
      %s20 = int_to_ptr.vmem [resolvable:$true] %s19
      %22 = dma.hbm_to_vmem [thread:$0]  %s0, 128, %s20, [#allocation4]
    $region5: #{tpu_custom_call.1} parent=1 // pred_fallthru
      _
    // Predicated region
    $region6: #{tpu_custom_call.1} parent=1 // pred_check
      _
    $region7: #{tpu_custom_call.1} parent=1 // pred_check_branch
      %24 = sbr.rel (0) target = $region9
    $region8: #{tpu_custom_call.1} parent=1 // pred_region
      _
    $region9: #{tpu_custom_call.1} parent=1 // pred_fallthru
      _
    // Predicated region
    $region10: #{tpu_custom_call.1} parent=1 // pred_check
      _
    $region11: #{tpu_custom_call.1} parent=1 // pred_check_branch
      %26 = sbr.rel (0) target = $region13
    $region12: #{tpu_custom_call.1} parent=1 // pred_region
      _
    $region13: #{tpu_custom_call.1} parent=1 // pred_fallthru
      _
    // Predicated region
    $region14: #{tpu_custom_call.1} parent=1 // pred_check
      _
    $region15: #{tpu_custom_call.1} parent=1 // pred_check_branch
      %28 = sbr.rel (0) target = $region17
    $region16: #{tpu_custom_call.1} parent=1 // pred_region
      %s30 = ssub.s32 1024, 1024
      %31 = vsyncadd [#allocation7], %s30
      %s32 = sshll.u32 [#allocation6], 4
      %s33 = int_to_ptr.vmem [resolvable:$true] %s32
      %38 = dma.hbm_to_vmem [thread:$0]  %s3, 1024, %s33, [#allocation7], 256, 256, 16
    $region17: #{tpu_custom_call.1} parent=1 // pred_fallthru
      _
    // Predicated region
    $region18: #{tpu_custom_call.1} parent=1 // pred_check
      _
    $region19: #{tpu_custom_call.1} parent=1 // pred_check_branch
      %40 = sbr.rel (0) target = $region21
    $region20: #{tpu_custom_call.1} parent=1 // pred_region
      _
    $region21: #{tpu_custom_call.1} parent=1 // pred_fallthru
      _
    // Predicated region
    $region22: #{tpu_custom_call.1} parent=1 // pred_check
      _
    $region23: #{tpu_custom_call.1} parent=1 // pred_check_branch
      %42 = sbr.rel (0) target = $region25
    $region24: #{tpu_custom_call.1} parent=1 // pred_region
      %43 = dma.done [#allocation4], 128
    $region25: #{tpu_custom_call.1} parent=1 // pred_fallthru
      _
    // Predicated region
    $region26: #{tpu_custom_call.1} parent=1 // pred_check
      _
    $region27: #{tpu_custom_call.1} parent=1 // pred_check_branch
      %45 = sbr.rel (0) target = $region29
    $region28: #{tpu_custom_call.1} parent=1 // pred_region
      %46 = dma.done [#allocation7], 1024
    $region29: #{tpu_custom_call.1} parent=1 // pred_fallthru
      _
    %p47 = scmp.eq.s32.totalorder 0, 0
    // Predicated region
    $region30: #{tpu_custom_call.1} parent=1 // pred_check
      %p48 = pneg %p47
    $region31: #{tpu_custom_call.1} parent=1 // pred_check_branch
      %50 = sbr.rel (%p48) target = $region33
    $region32: #{tpu_custom_call.1} parent=1 // pred_region
      %51 = vst [vmem:[#allocation2] sm:$0xff] 0.0
      %52 = vst [vmem:[#allocation2 + $0x8] sm:$0xff] 0.0
    $region33: #{tpu_custom_call.1} parent=1 // pred_fallthru
      _
    %v53 = vld [vmem:[#allocation3] sm:$0xff]
    %v54 = vld [vmem:[%s1] sm:$0x1]
    %v56 = vlaneseq
    %v57 = vshrl.u32 %v56, 7
    %v58 = vsub.s32 0, %v57
    %v59 = vrot.slane %v54, %v58
    %v61 = vmul.f32 %v53, %v59
    %v62 = vld [vmem:[%s2] sm:$0x1]
    %v64 = vlaneseq
    %v65 = vshrl.u32 %v64, 7
    %v66 = vsub.s32 0, %v65
    %v67 = vrot.slane %v62, %v66
    %v69 = vadd.f32 %v61, %v67
    %v70 = vld [vmem:[#allocation2] sm:$0xff]
    %v71 = vld [vmem:[#allocation2 + $0x8] sm:$0xff]
    %v72 = vld [vmem:[#allocation6] sm:$0xff]
    %v73 = vld [vmem:[#allocation6 + $0x8] sm:$0xff]
    %v74 = vld [vmem:[#allocation6 + $0x10] sm:$0xff]
    %v75 = vld [vmem:[#allocation6 + $0x18] sm:$0xff]
    %v76 = vld [vmem:[#allocation6 + $0x20] sm:$0xff]
    %v77 = vld [vmem:[#allocation6 + $0x28] sm:$0xff]
    %v78 = vld [vmem:[#allocation6 + $0x30] sm:$0xff]
    %v79 = vld [vmem:[#allocation6 + $0x38] sm:$0xff]
    %vm80 = vcmask 261120
    %v82 = vsel %vm80, %v69, 0
    %84 = vmatprep.subr.mxu0 %v73
    %85 = vmatpush1.msra.mxu0 %v72
    %86 = vmatprep.subr.mxu0 %v75
    %87 = vmatpush1.msra.mxu0 %v74
    %88 = vmatprep.subr.mxu0 %v77
    %89 = vmatpush1.msra.mxu0 %v76
    %90 = vmatprep.subr.mxu0 %v79
    %91 = vmatpush1.msra.mxu0 %v78
    %92 = vmatprep.subr.mxu0 0.0
    %93 = vmatpush1.msra.mxu0 0.0
    %94 = vmatprep.subr.mxu0 0.0
    %95 = vmatpush1.msra.mxu0 0.0
    %96 = vmatprep.subr.mxu0 0.0
    %97 = vmatpush1.msra.mxu0 0.0
    %98 = vmatprep.subr.mxu0 0.0
    %99 = vmatpush1.msra.mxu0 0.0
    %100 = vmatprep.subr.mxu0 0.0
    %101 = vmatpush1.msra.mxu0 0.0
    %102 = vmatprep.subr.mxu0 0.0
    %103 = vmatpush1.msra.mxu0 0.0
    %104 = vmatprep.subr.mxu0 0.0
    %105 = vmatpush1.msra.mxu0 0.0
    %106 = vmatprep.subr.mxu0 0.0
    %107 = vmatpush1.msra.mxu0 0.0
    %108 = vmatprep.subr.mxu0 0.0
    %109 = vmatpush1.msra.mxu0 0.0
    %110 = vmatprep.subr.mxu0 0.0
    %111 = vmatpush1.msra.mxu0 0.0
    %112 = vmatprep.subr.mxu0 0.0
    %113 = vmatpush1.msra.mxu0 0.0
    %114 = vmatprep.subr.mxu0 0.0
    %115 = vmatpush1.msra.mxu0 0.0
    %116 = vmatprep.subr.mxu0 0.0
    %117 = vmatpush1.msra.mxu0 0.0
    %118 = vmatprep.subr.mxu0 0.0
    %119 = vmatpush1.msra.mxu0 0.0
    %120 = vmatprep.subr.mxu0 0.0
    %121 = vmatpush1.msra.mxu0 0.0
    %122 = vmatprep.subr.mxu0 0.0
    %123 = vmatpush1.msra.mxu0 0.0
    %124 = vmatprep.subr.mxu0 0.0
    %125 = vmatpush1.msra.mxu0 0.0
    %126 = vmatprep.subr.mxu0 0.0
    %127 = vmatpush1.msra.mxu0 0.0
    %128 = vmatprep.subr.mxu0 0.0
    %129 = vmatpush1.msra.mxu0 0.0
    %130 = vmatprep.subr.mxu0 0.0
    %131 = vmatpush1.msra.mxu0 0.0
    %132 = vmatprep.subr.mxu0 0.0
    %133 = vmatpush1.msra.mxu0 0.0
    %134 = vmatprep.subr.mxu0 0.0
    %135 = vmatpush1.msra.mxu0 0.0
    %136 = vmatprep.subr.mxu0 0.0
    %137 = vmatpush1.msra.mxu0 0.0
    %138 = vmatprep.subr.mxu0 0.0
    %139 = vmatpush1.msra.mxu0 0.0
    %140 = vmatprep.subr.mxu0 0.0
    %141 = vmatpush1.msra.mxu0 0.0
    %142 = vmatprep.subr.mxu0 0.0
    %143 = vmatpush1.msra.mxu0 0.0
    %144 = vmatprep.subr.mxu0 0.0
    %145 = vmatpush1.msra.mxu0 0.0
    %146 = vmatprep.subr.mxu0 0.0
    %147 = vmatpush1.msra.mxu0 0.0
    %148 = vmatprep.mubr.f32.mxu0 0.0
    %149 = vmatmul.mubr.f32.gmra.mrb[0].mxu0 %v82
    %v150 = vpop.f32.mrb[0].mxu0
    %v151 = vadd.f32 0.0, %v150
    %v152 = vpop.f32.mrb[0].mxu0
    %v153 = vadd.f32 0.0, %v152
    %154 = vdwg.mxu0
    %v155 = vadd.f32 %v70, %v151
    %v156 = vadd.f32 %v71, %v153
    %157 = vst [vmem:[#allocation2] sm:$0xff] %v155
    %158 = vst [vmem:[#allocation2 + $0x8] sm:$0xff] %v156
    // Predicated region
    $region34: #{tpu_custom_call.1} parent=1 // pred_check
      %p159 = pneg %p47
    $region35: #{tpu_custom_call.1} parent=1 // pred_check_branch
      %161 = sbr.rel (%p159) target = $region37
    $region36: #{tpu_custom_call.1} parent=1 // pred_region
      %v162 = vld [vmem:[#allocation2] sm:$0xff]
      %v163 = vld [vmem:[#allocation2 + $0x8] sm:$0xff]
      %v164 = vld [vmem:[%s4] sm:$0x3]
      %v166 = vlaneseq
      %v167 = vshrl.u32 %v166, 7
      %v168 = vsub.s32 0, %v167
      %v169 = vrot.slane %v164, %v168
      %v170 = vlaneseq
      %v171 = vshrl.u32 %v170, 7
      %v172 = vsub.s32 1, %v171
      %v173 = vrot.slane %v164, %v172
      %v176 = vadd.f32 %v162, %v169
      %v177 = vadd.f32 %v163, %v173
      %v178 = vxor.u32 %v176, 2147483648
      %v179 = vmul.f32 %v178, 1.442695
      %v180 = vpow.pop %v179
      %v181 = vadd.f32 %v180, 1.0
      %v182 = vrcp.pop %v181
      %v183 = vmul.f32 1.0, %v182
      %v184 = vmul.f32 %v176, %v183
      %v185 = vmul.f32 %v184, %v177
      %186 = vst [vmem:[#allocation8] sm:$0xff] %v185
    $region37: #{tpu_custom_call.1} parent=1 // pred_fallthru
      _
    // Predicated region
    $region38: #{tpu_custom_call.1} parent=1 // pred_check
      _
    $region39: #{tpu_custom_call.1} parent=1 // pred_check_branch
      %188 = sbr.rel (0) target = $region41
    $region40: #{tpu_custom_call.1} parent=1 // pred_region
      %s190 = ssub.s32 128, 128
      %191 = vsyncadd [#allocation5], %s190
      %s193 = sshll.u32 [#allocation8], 4
      %s194 = int_to_ptr.vmem [resolvable:$true] %s193
      %196 = dma.vmem_to_hbm [thread:$0]  %s194, 128, %s5, [#allocation5]
    $region41: #{tpu_custom_call.1} parent=1 // pred_fallthru
      _
    // Predicated region
    $region42: #{tpu_custom_call.1} parent=1 // pred_check
      _
    $region43: #{tpu_custom_call.1} parent=1 // pred_check_branch
      %198 = sbr.rel (0) target = $region45
    $region44: #{tpu_custom_call.1} parent=1 // pred_region
      %199 = dma.done [#allocation5], 128
    $region45: #{tpu_custom_call.1} parent=1 // pred_fallthru
      _
    %200 = vsyncpa [#allocation4], 1
    %201 = vsyncpa [#allocation7], 1
    %202 = vsyncpa [#allocation5], 1

</llo_original>
